<compile_context>
chip_gen: v7x
topology: tpu7x:2x2x1
jax: 0.10.0
libtpu: 0.0.40
codegen_flags: <defaults>
</compile_context>

<pallas_src>
import jax
import jax.numpy as jnp
import numpy as np
from jax.experimental import pallas as pl
from jax.experimental.pallas import tpu as pltpu

EPS = 1e-5


def _round_up(x, m):
    return ((x + m - 1) // m) * m


def _vmem_limit_bytes():
    """Chip-aware VMEM budget: physical capacity minus headroom for Mosaic
    internal scratch — never request the full physical VMEM (64 MiB on v7x)."""
    cap = 128 * 1024 * 1024  # v5e / v6e physical
    try:
        info = pltpu.get_tpu_info()
        cap = int(getattr(info, "vmem_capacity_bytes", cap))
    except Exception:
        pass
    return int(max(cap - 16 * 1024 * 1024, 32 * 1024 * 1024))


def _choose_lane_tile(N, C, vmem_limit):
    """Feature-tile width TC (multiple of 128), adapted to N and the chip.

    Targets ~4 MiB of x per grid step, bounded by the VMEM budget assuming
    2 in + 2 out double-buffers plus the in-kernel f32 'centered' temporary
    (~6 tile copies), and shrunk so the grid keeps >= 8 steps when C allows
    (so both v7x TensorCores get >= 4 pipelined steps each).
    """
    c_lanes = _round_up(C, 128)
    x_bytes_per_row = max(N, 1) * 4

    tc_by_vmem = (vmem_limit // (6 * x_bytes_per_row * 128)) * 128
    tc_by_target = ((4 * 1024 * 1024) // x_bytes_per_row // 128) * 128

    tc = min(2048, c_lanes, max(128, tc_by_target), max(128, tc_by_vmem))
    tc = max(tc, 128)

    min_steps = 8
    while tc > 128 and pl.cdiv(C, tc) < min_steps and c_lanes // 128 >= min_steps:
        tc -= 128

    return tc


def _bn_kernel(params_ref, x_ref, o_ref):
    # One (N, TC) tile resident in VMEM; reduction over the batch axis
    # (sublanes).  The tile's sublane extent IS the true batch size N, so the
    # statistics are exact.  On a partial edge tile the out-of-bounds lanes
    # hold garbage, but each lane's statistics are independent and the
    # out-of-bounds stores are dropped, so visible outputs are unaffected.
    x = x_ref[...]                                            # [N, TC] f32
    n = x.shape[0]
    inv_n = jnp.float32(1.0 / n)
    mean = jnp.sum(x, axis=0, keepdims=True) * inv_n          # [1, TC]
    # Two-pass (centered) variance: numerically safer than E[x^2]-mean^2; the
    # [N, TC] temporary is accounted for in the wrapper's VMEM budget.
    centered = x - mean
    var = jnp.sum(centered * centered, axis=0, keepdims=True) * inv_n  # biased
    inv_std = jax.lax.rsqrt(var + EPS)                        # [1, TC]
    # Fold the affine (weight = gamma fill, bias = beta = 0) into one
    # scale/shift pass per element.
    gamma = params_ref[0]
    beta = params_ref[1]
    scale = inv_std * gamma                                   # [1, TC]
    shift = beta - mean * scale                               # [1, TC]
    o_ref[...] = (x * scale + shift).astype(o_ref.dtype)


def batchnorm_v2_forward(x, gamma, beta=0.0):
    """Training-mode BatchNorm1d forward on x: [N, C] float32.

    gamma / beta are the scalar values the module fills bn.weight / bn.bias
    with (gamma1 or gamma2, and 0).  x is never padded: the last feature tile
    may be partial (masked stores on that one tile only).
    """
    N, C = x.shape
    vmem_limit = _vmem_limit_bytes()
    TC = _choose_lane_tile(N, C, vmem_limit)
    grid = (pl.cdiv(C, TC),)

    params = jnp.stack([jnp.asarray(gamma, jnp.float32),
                        jnp.asarray(beta, jnp.float32)])      # tiny, lives in SMEM

    out = pl.pallas_call(
        _bn_kernel,
        out_shape=jax.ShapeDtypeStruct((N, C), x.dtype),
        grid_spec=pltpu.PrefetchScalarGridSpec(
            num_scalar_prefetch=0,
            grid=grid,
            in_specs=[
                pl.BlockSpec(memory_space=pltpu.MemorySpace.SMEM),  # [gamma, beta]
                pl.BlockSpec((N, TC), lambda j: (0, j)),            # x tile
            ],
            out_specs=pl.BlockSpec((N, TC), lambda j: (0, j)),
        ),
        compiler_params=pltpu.CompilerParams(
            dimension_semantics=("parallel",),
            vmem_limit_bytes=vmem_limit,
        ),
    )(params, x)
    return out


def make_batchnorm_v2_gamma(batch_normalization_weight, mu=True):
    """Deterministic scalar weight matching BatchNorm_v2.__init__ (theta = 0)."""
    tau = jnp.float32(batch_normalization_weight)
    theta = jnp.float32(0.0)
    sig = jax.nn.sigmoid(theta)
    gamma1 = jnp.sqrt(1.0 - tau * sig)
    gamma2 = jnp.sqrt(tau * sig)
    return gamma1 if mu else gamma2


if __name__ == "__main__":
    dim_z = 32
    batch = 8
    tau = 0.5

    key = jax.random.PRNGKey(0)
    x = jax.random.normal(key, (batch, dim_z), dtype=jnp.float32)

    gamma = make_batchnorm_v2_gamma(tau, mu=True)

    out = batchnorm_v2_forward(x, gamma)
    out = jax.block_until_ready(out)

    # Reference check in plain JAX (training-mode batch norm, biased variance).
    mean = jnp.mean(x, axis=0, keepdims=True)
    var = jnp.mean((x - mean) ** 2, axis=0, keepdims=True)
    ref = (x - mean) / jnp.sqrt(var + EPS) * gamma
    np.testing.assert_allclose(np.asarray(out), np.asarray(ref), rtol=1e-5, atol=1e-5)

    print("KERNEL_OK")
</pallas_src>

<mosaic_0001>
module attributes {stable_mosaic.version = 11 : i64} {
  func.func @_bn_kernel(%arg0: i32, %arg1: memref<2xf32, #tpu.memory_space<smem>>, %arg2: memref<8x128xf32, #tpu.memory_space<vmem>>, %arg3: memref<8x128xf32, #tpu.memory_space<vmem>>) attributes {dimension_semantics = [#tpu.dimension_semantics<parallel>], iteration_bounds = array<i64: 1>, scalar_prefetch = 0 : i64, scratch_operands = 0 : i64, tpu.core_type = #tpu.core_type<tc>, window_params = [{transform_indices = @transform_0, window_bounds = array<i64: 2>}, {transform_indices = @transform_1, window_bounds = array<i64: 8, 128>}, {transform_indices = @transform_2, window_bounds = array<i64: 8, 128>}]} {
    %c0 = arith.constant 0 : index
    %c0_0 = arith.constant 0 : index
    %0 = vector.load %arg2[%c0, %c0_0] : memref<8x128xf32, #tpu.memory_space<vmem>>, vector<8x128xf32>
    %cst = arith.constant dense<0.000000e+00> : vector<128xf32>
    %1 = vector.multi_reduction <add>, %0, %cst [0] : vector<8x128xf32> to vector<128xf32>
    %2 = vector.shape_cast %1 : vector<128xf32> to vector<1x128xf32>
    %cst_1 = arith.constant 1.250000e-01 : f32
    %3 = vector.broadcast %cst_1 : f32 to vector<1x128xf32>
    %4 = arith.mulf %2, %3 : vector<1x128xf32>
    %5 = vector.broadcast %4 : vector<1x128xf32> to vector<8x128xf32>
    %6 = arith.subf %0, %5 : vector<8x128xf32>
    %7 = arith.mulf %6, %6 : vector<8x128xf32>
    %cst_2 = arith.constant dense<0.000000e+00> : vector<128xf32>
    %8 = vector.multi_reduction <add>, %7, %cst_2 [0] : vector<8x128xf32> to vector<128xf32>
    %9 = vector.shape_cast %8 : vector<128xf32> to vector<1x128xf32>
    %cst_3 = arith.constant 1.250000e-01 : f32
    %10 = vector.broadcast %cst_3 : f32 to vector<1x128xf32>
    %11 = arith.mulf %9, %10 : vector<1x128xf32>
    %cst_4 = arith.constant 9.99999974E-6 : f32
    %12 = vector.broadcast %cst_4 : f32 to vector<1x128xf32>
    %13 = arith.addf %11, %12 : vector<1x128xf32>
    %14 = math.rsqrt %13 : vector<1x128xf32>
    %c0_5 = arith.constant 0 : index
    %15 = memref.load %arg1[%c0_5] : memref<2xf32, #tpu.memory_space<smem>>
    %c1 = arith.constant 1 : index
    %16 = memref.load %arg1[%c1] : memref<2xf32, #tpu.memory_space<smem>>
    %17 = vector.broadcast %15 : f32 to vector<1x128xf32>
    %18 = arith.mulf %14, %17 : vector<1x128xf32>
    %19 = arith.mulf %4, %18 : vector<1x128xf32>
    %20 = vector.broadcast %16 : f32 to vector<1x128xf32>
    %21 = arith.subf %20, %19 : vector<1x128xf32>
    %22 = vector.broadcast %18 : vector<1x128xf32> to vector<8x128xf32>
    %23 = arith.mulf %0, %22 : vector<8x128xf32>
    %24 = vector.broadcast %21 : vector<1x128xf32> to vector<8x128xf32>
    %25 = arith.addf %23, %24 : vector<8x128xf32>
    %c0_6 = arith.constant 0 : index
    %c0_7 = arith.constant 0 : index
    %26 = vector.load %arg3[%c0_6, %c0_7] : memref<8x128xf32, #tpu.memory_space<vmem>>, vector<8x128xf32>
    tpu.vector_store %arg3[%c0_6, %c0_7], %25 {strides = array<i32>} : memref<8x128xf32, #tpu.memory_space<vmem>>, vector<8x128xf32>,
    return
  }
  func.func @transform_0(%arg0: i32) -> i32 {
    %c0_i32 = arith.constant 0 : i32
    %c0_i32_0 = arith.constant 0 : i32
    return %c0_i32 : i32
  }
  func.func @transform_1(%arg0: i32) -> (i32, i32) {
    %c0_i32 = arith.constant 0 : i32
    %c0_i32_0 = arith.constant 0 : i32
    return %c0_i32, %arg0 : i32, i32
  }
  func.func @transform_2(%arg0: i32) -> (i32, i32) {
    %c0_i32 = arith.constant 0 : i32
    %c0_i32_0 = arith.constant 0 : i32
    return %c0_i32, %arg0 : i32, i32
  }
}

</mosaic_0001>

<llo_original>
// kernel: tpu_custom_call.1
$region0: #{tpu_custom_call.1}
  #allocation0 [shape = 'u32[]', space=smem, size = 0x4, offset = 0x4, fixed_abs, tag = 'smem constant byte address 0x4 - core index']
  #allocation1 [shape = 'u32[144,128]{1,0:T(1,128)}', space=vmem, size = 0x12000, scoped, tag = 'internal scratch']
  %s0 = inlined_call_operand.hbm [shape: f32[2], index: 0, kind: input, shape index: {}]
  %s1 = inlined_call_operand.hbm [shape: f32[8,32], index: 1, kind: input, shape index: {}]
  %s2 = inlined_call_operand.hbm [shape: f32[8,32], index: 2, kind: output, shape index: {}]
  %s3 = sld [smem:[#allocation0]]
  $region26: #{tpu_custom_call.1} parent=0
    _
  %s5 = ssub.s32 1, %s3
  %s6 = scalar_select 0, %s5, %s3
  $region1: #{tpu_custom_call.1} parent=0
    #allocation2 [shape = 'u8[512]{0}', space=smem, size = 0x200, scoped, tag = 'input window, operand 0, single buffered']
    #allocation3 [shape = 's32[1]{0}', space=sflag, size = 0x4, scoped, tag = 'scoped memory for tpu_custom_call.1']
    #allocation4 [shape = 's32[1]{0}', space=sflag, size = 0x4, scoped, tag = 'scoped memory for tpu_custom_call.1']
    #allocation5 [shape = 's32[1]{0}', space=sflag, size = 0x4, scoped, tag = 'scoped memory for tpu_custom_call.1']
    #allocation6 [shape = 'u8[4096]{0}', space=vmem, size = 0x1000, scoped, tag = 'input window, operand 1, single buffered']
    #allocation7 [shape = 'u8[4096]{0}', space=vmem, size = 0x1000, scoped, tag = 'output window, operand 0, single buffered']
    %7 = vsyncpa [#allocation5], 0
    %8 = vsyncpa [#allocation3], 0
    %9 = vsyncpa [#allocation4], 0
    // Predicated region
    $region2: #{tpu_custom_call.1} parent=1 // pred_check
      _
    $region3: #{tpu_custom_call.1} parent=1 // pred_check_branch
      %11 = sbr.rel (0) target = $region5
    $region4: #{tpu_custom_call.1} parent=1 // pred_region
      %s13 = ssub.s32 16, 16
      %14 = vsyncadd [#allocation5], %s13
      %17 = dma.hbm_to_smem %s0, 16, [#allocation2], [#allocation5]
    $region5: #{tpu_custom_call.1} parent=1 // pred_fallthru
      _
    // Predicated region
    $region6: #{tpu_custom_call.1} parent=1 // pred_check
      _
    $region7: #{tpu_custom_call.1} parent=1 // pred_check_branch
      %19 = sbr.rel (0) target = $region9
    $region8: #{tpu_custom_call.1} parent=1 // pred_region
      %s21 = ssub.s32 128, 128
      %22 = vsyncadd [#allocation3], %s21
      %s24 = sshll.u32 [#allocation6], 4
      %s25 = int_to_ptr.vmem [resolvable:$true] %s24
      %27 = dma.hbm_to_vmem [thread:$0]  %s1, 128, %s25, [#allocation3]
    $region9: #{tpu_custom_call.1} parent=1 // pred_fallthru
      _
    // Predicated region
    $region10: #{tpu_custom_call.1} parent=1 // pred_check
      _
    $region11: #{tpu_custom_call.1} parent=1 // pred_check_branch
      %29 = sbr.rel (0) target = $region13
    $region12: #{tpu_custom_call.1} parent=1 // pred_region
      %30 = dma.done [#allocation5], 16
    $region13: #{tpu_custom_call.1} parent=1 // pred_fallthru
      _
    // Predicated region
    $region14: #{tpu_custom_call.1} parent=1 // pred_check
      _
    $region15: #{tpu_custom_call.1} parent=1 // pred_check_branch
      %32 = sbr.rel (0) target = $region17
    $region16: #{tpu_custom_call.1} parent=1 // pred_region
      %33 = dma.done [#allocation3], 128
    $region17: #{tpu_custom_call.1} parent=1 // pred_fallthru
      _
    %34 = sfence
    %v35 = vld [vmem:[#allocation6] sm:$0xff]
    %v36 = vrot.slane %v35, 4
    %v37 = vadd.f32 %v35, %v36
    %v38 = vrot.slane %v37, 2
    %v39 = vadd.f32 %v37, %v38
    %v40 = vrot.slane %v39, 1
    %v41 = vadd.f32 %v39, %v40
    %v42 = vmul.f32 %v41, 0.125
    %v43 = vsub.f32 %v35, %v42
    %v44 = vmul.f32 %v43, %v43
    %v45 = vrot.slane %v44, 4
    %v46 = vadd.f32 %v44, %v45
    %v47 = vrot.slane %v46, 2
    %v48 = vadd.f32 %v46, %v47
    %v49 = vrot.slane %v48, 1
    %v50 = vadd.f32 %v48, %v49
    %v51 = vmul.f32 %v50, 0.125
    %v52 = vadd.f32 %v51, 1e-05
    %v53 = vrsqrt.pop %v52
    %s54 = sld [smem:[#allocation2]]
    %s55 = sld [smem:[#allocation2 + $0x1]]
    %v56 = vstv %s54
    %v57 = vmul.f32 %v53, %v56
    %v58 = vmul.f32 %v42, %v57
    %v59 = vstv %s55
    %v60 = vsub.f32 %v59, %v58
    %v61 = vmul.f32 %v35, %v57
    %v62 = vadd.f32 %v61, %v60
    %63 = vst [vmem:[#allocation7] sm:$0xff] %v62
    // Predicated region
    $region18: #{tpu_custom_call.1} parent=1 // pred_check
      _
    $region19: #{tpu_custom_call.1} parent=1 // pred_check_branch
      %65 = sbr.rel (0) target = $region21
    $region20: #{tpu_custom_call.1} parent=1 // pred_region
      %s67 = ssub.s32 128, 128
      %68 = vsyncadd [#allocation4], %s67
      %s70 = sshll.u32 [#allocation7], 4
      %s71 = int_to_ptr.vmem [resolvable:$true] %s70
      %73 = dma.vmem_to_hbm [thread:$0]  %s71, 128, %s2, [#allocation4]
    $region21: #{tpu_custom_call.1} parent=1 // pred_fallthru
      _
    // Predicated region
    $region22: #{tpu_custom_call.1} parent=1 // pred_check
      _
    $region23: #{tpu_custom_call.1} parent=1 // pred_check_branch
      %75 = sbr.rel (0) target = $region25
    $region24: #{tpu_custom_call.1} parent=1 // pred_region
      %76 = dma.done [#allocation4], 128
    $region25: #{tpu_custom_call.1} parent=1 // pred_fallthru
      _
    %77 = vsyncpa [#allocation3], 1
    %78 = vsyncpa [#allocation4], 1
    %79 = vsyncpa [#allocation5], 1

</llo_original>
